<compile_context>
chip_gen: v6e
topology: v6e:2x2x1
jax: 0.10.0
libtpu: 0.0.40
codegen_flags: <defaults>
</compile_context>

<pallas_src>
import jax
import jax.numpy as jnp
from jax.experimental import pallas as pl
from jax.experimental.pallas import tpu as pltpu


# ----------------------------------------------------------------------------- kernel
def _mlp_kernel(x_ref, w1_ref, b1_ref, w2_ref, b2_ref, w3_ref, b3_ref, o_ref):
    # In-kernel f32 -> bf16 cast (VPU, hidden under MXU work); avoids a separate
    # XLA convert pass over x in HBM.
    x = x_ref[...].astype(jnp.bfloat16)

    # Layer 1: bf16 MXU matmul with f32 accumulation; bias add + ReLU in f32.
    h1 = jnp.dot(x, w1_ref[...], preferred_element_type=jnp.float32)
    h1 = jnp.maximum(h1 + b1_ref[...], 0.0)

    # Layer 2: re-cast activations to bf16 so the MXU runs at its bf16 rate.
    h2 = jnp.dot(h1.astype(jnp.bfloat16), w2_ref[...],
                 preferred_element_type=jnp.float32)
    h2 = jnp.maximum(h2 + b2_ref[...], 0.0)

    # Output layer (out_features == 1): VPU multiply + cross-lane reduce (XLU slot)
    # instead of a degenerate single-column MXU matmul. b3 is an SMEM scalar.
    logit = jnp.sum(h2 * w3_ref[...], axis=-1, keepdims=True) + b3_ref[0, 0]

    # Exact sigmoid: f32 exp (EUP) + exact divide -> probabilities are always <= 1.
    o_ref[...] = (1.0 / (1.0 + jnp.exp(-logit))).astype(o_ref.dtype)


# ------------------------------------------------------------------- tile / VMEM logic
_TILE_CANDIDATES = (8192, 4096, 2048, 1024, 512, 256, 128, 64, 32, 16, 8)


def _device_info():
    """(is_v7x, vmem_limit_bytes) with a conservative fallback."""
    try:
        kind = jax.devices()[0].device_kind.lower()
    except Exception:  # detection failure -> conservative settings
        kind = ""
    is_v7 = ("v7" in kind) or ("tpu7" in kind)
    # v7x has 64 MiB VMEM per TensorCore -> keep the scoped limit at 32 MiB.
    # v5e/v6e have 128 MiB -> allow 64 MiB so bigger batch tiles fit.
    vmem_limit = 32 * 1024 * 1024 if (is_v7 or kind == "") else 64 * 1024 * 1024
    return is_v7, vmem_limit


def _working_set_bytes(tb, F, H1, H2):
    """Approximate VMEM working set for one grid step (conservative)."""
    x_bytes = 2 * tb * F * 4                       # f32 x tile, double-buffered
    out_bytes = 2 * tb * 4                         # f32 output column, double-buffered
    w_bytes = 2 * (F * H1 * 2 + H1 * H2 * 2)       # bf16 weights, double-buffered
    w_bytes += 2 * (H1 + H2 + H2) * 4              # f32 biases + w3 row
    # h1 f32, h1 bf16 recast, h2 f32, h2*w3 elementwise temp (f32)
    act_bytes = tb * (H1 * 4 + H1 * 2 + H2 * 4 + H2 * 4)
    return x_bytes + out_bytes + w_bytes + act_bytes


def _pick_batch_tile(batch, requested, F, H1, H2, budget_bytes):
    if requested is not None:
        tb = requested
        if batch % tb != 0:
            raise ValueError(f"batch_tile={tb} must divide batch={batch}")
        if tb != batch and tb % 8 != 0:
            raise ValueError("batch_tile must be a multiple of 8 (f32 sublane tiling) "
                             "or equal the full batch")
        return tb
    # Largest candidate that divides the batch and fits the VMEM budget.
    for cand in _TILE_CANDIDATES:
        if cand <= batch and batch % cand == 0 and \
                _working_set_bytes(cand, F, H1, H2) <= budget_bytes:
            return cand
    return batch  # single-step grid; full-extent block is always layout-legal


# ------------------------------------------------------------------------------ params
def prepare_params(params):
    """One-time cast/relayout of parameters (call once, reuse across forwards).

    Keeps per-call convert ops (extra HBM passes + dispatches) out of inference.
    """
    H2 = params["w2"].shape[1]
    return {
        "w1": params["w1"].astype(jnp.bfloat16),
        "b1": params["b1"].reshape(1, -1).astype(jnp.float32),
        "w2": params["w2"].astype(jnp.bfloat16),
        "b2": params["b2"].reshape(1, -1).astype(jnp.float32),
        "w3_row": params["w3"].reshape(1, H2).astype(jnp.float32),
        "b3": params["b3"].reshape(1, 1).astype(jnp.float32),
    }


# ----------------------------------------------------------------------------- wrapper
def ahaab_binder_forward(x, prepped, *, batch_tile=None):
    """Fused 3-layer MLP binary classifier.

    x:       (B, feature_size) float32 (cast to bf16 inside the kernel)
    prepped: output of prepare_params()
    returns: (B, 1) float32 probabilities in [0, 1]
    """
    B, F = x.shape
    H1 = prepped["w1"].shape[1]
    H2 = prepped["w2"].shape[1]

    is_v7, vmem_limit = _device_info()
    budget = vmem_limit - 4 * 1024 * 1024  # headroom for compiler scratch
    tb = _pick_batch_tile(B, batch_tile, F, H1, H2, budget)

    steps = B // tb
    grid = (steps,)
    # v7x: shard the batch axis across both TensorCores when there is enough work.
    use_core_parallel = is_v7 and steps >= 2 and steps % 2 == 0
    dim_sem = (pltpu.CORE_PARALLEL,) if use_core_parallel else (pltpu.PARALLEL,)

    full = lambda i: (0, 0)      # weights / biases: same block every step (stay resident)
    rowblk = lambda i: (i, 0)    # x / output: tile along batch

    cost = pl.CostEstimate(
        flops=int(2 * B * (F * H1 + H1 * H2 + H2)),
        transcendentals=int(B),  # one exp per row
        bytes_accessed=int(
            B * F * 4                       # x (f32, cast in-kernel)
            + F * H1 * 2 + H1 * H2 * 2      # w1, w2 (bf16)
            + (H1 + H2 + H2 + 1) * 4        # b1, b2, w3 row, b3 (f32)
            + B * 4                         # output (f32)
        ),
    )

    out = pl.pallas_call(
        _mlp_kernel,
        out_shape=jax.ShapeDtypeStruct((B, 1), jnp.float32),
        grid=grid,
        in_specs=[
            pl.BlockSpec((tb, F), rowblk),           # x  (f32)
            pl.BlockSpec((F, H1), full),             # w1 (bf16)
            pl.BlockSpec((1, H1), full),             # b1 (f32)
            pl.BlockSpec((H1, H2), full),            # w2 (bf16)
            pl.BlockSpec((1, H2), full),             # b2 (f32)
            pl.BlockSpec((1, H2), full),             # w3 row (f32)
            pl.BlockSpec(memory_space=pltpu.SMEM),   # b3 scalar (SMEM)
        ],
        out_specs=pl.BlockSpec((tb, 1), rowblk),
        compiler_params=pltpu.CompilerParams(
            dimension_semantics=dim_sem,
            vmem_limit_bytes=vmem_limit,
        ),
        cost_estimate=cost,
    )(x, prepped["w1"], prepped["b1"], prepped["w2"], prepped["b2"],
      prepped["w3_row"], prepped["b3"])
    return out


# --------------------------------------------------------------------------- reference
def init_params(key, feature_size, hidden_layer1=512, hidden_layer2=256):
    """Deterministic synthetic init mimicking nn.Linear's U(-1/sqrt(in), 1/sqrt(in))."""
    ks = jax.random.split(key, 6)

    def uniform(k, shape, fan_in):
        bound = 1.0 / jnp.sqrt(jnp.float32(fan_in))
        return jax.random.uniform(k, shape, jnp.float32, -bound, bound)

    return {
        "w1": uniform(ks[0], (feature_size, hidden_layer1), feature_size),
        "b1": uniform(ks[1], (1, hidden_layer1), feature_size),
        "w2": uniform(ks[2], (hidden_layer1, hidden_layer2), hidden_layer1),
        "b2": uniform(ks[3], (1, hidden_layer2), hidden_layer1),
        "w3": uniform(ks[4], (hidden_layer2, 1), hidden_layer2),
        "b3": uniform(ks[5], (1, 1), hidden_layer2),
    }


def reference_forward(x, p):
    h1 = jnp.maximum(x @ p["w1"] + p["b1"], 0.0)
    h2 = jnp.maximum(h1 @ p["w2"] + p["b2"], 0.0)
    return jax.nn.sigmoid(h2 @ p["w3"] + p["b3"])


if __name__ == "__main__":
    key = jax.random.PRNGKey(0)
    k_x, k_p = jax.random.split(key)

    batch, feature_size = 32, 32
    x = jax.random.normal(k_x, (batch, feature_size), jnp.float32)
    raw_params = init_params(k_p, feature_size)       # hidden sizes 512 / 256 as in the module
    params = prepare_params(raw_params)                # one-time cast/relayout

    # batch_tile=16 exercises a multi-step grid (pipelined x DMA, batch axis sharded).
    out = jax.block_until_ready(ahaab_binder_forward(x, params, batch_tile=16))

    ref = reference_forward(x, raw_params)
    assert out.shape == (batch, 1)
    assert bool(jnp.all((out >= 0.0) & (out <= 1.0)))
    max_diff = float(jnp.max(jnp.abs(out - ref)))
    # bf16 matmul inputs => compare to the f32 reference with bf16-consistent tolerance.
    assert max_diff < 2e-2, f"max abs diff vs f32 reference: {max_diff}"

    print("KERNEL_OK")
</pallas_src>

<mosaic_0001>
module attributes {stable_mosaic.version = 11 : i64} {
  func.func @_mlp_kernel(%arg0: i32, %arg1: memref<16x32xf32, #tpu.memory_space<vmem>>, %arg2: memref<32x512xbf16, #tpu.memory_space<vmem>>, %arg3: memref<1x512xf32, #tpu.memory_space<vmem>>, %arg4: memref<512x256xbf16, #tpu.memory_space<vmem>>, %arg5: memref<1x256xf32, #tpu.memory_space<vmem>>, %arg6: memref<1x256xf32, #tpu.memory_space<vmem>>, %arg7: memref<1x1xf32, #tpu.memory_space<smem>>, %arg8: memref<16x1xf32, #tpu.memory_space<vmem>>) attributes {dimension_semantics = [#tpu.dimension_semantics<parallel>], iteration_bounds = array<i64: 2>, scalar_prefetch = 0 : i64, scratch_operands = 0 : i64, tpu.core_type = #tpu.core_type<tc>, window_params = [{transform_indices = @transform_0, window_bounds = array<i64: 16, 32>}, {pipeline_mode = #tpu.pipeline_mode<synchronous>, transform_indices = @transform_1, window_bounds = array<i64: 32, 512>}, {pipeline_mode = #tpu.pipeline_mode<synchronous>, transform_indices = @transform_2, window_bounds = array<i64: 1, 512>}, {pipeline_mode = #tpu.pipeline_mode<synchronous>, transform_indices = @transform_3, window_bounds = array<i64: 512, 256>}, {pipeline_mode = #tpu.pipeline_mode<synchronous>, transform_indices = @transform_4, window_bounds = array<i64: 1, 256>}, {pipeline_mode = #tpu.pipeline_mode<synchronous>, transform_indices = @transform_5, window_bounds = array<i64: 1, 256>}, {transform_indices = @transform_6, window_bounds = array<i64: 1, 1>}, {transform_indices = @transform_7, window_bounds = array<i64: 16, 1>}]} {
    %c0 = arith.constant 0 : index
    %c0_0 = arith.constant 0 : index
    %0 = vector.load %arg1[%c0, %c0_0] : memref<16x32xf32, #tpu.memory_space<vmem>>, vector<16x32xf32>
    %1 = arith.truncf %0 : vector<16x32xf32> to vector<16x32xbf16>
    %c0_1 = arith.constant 0 : index
    %c0_2 = arith.constant 0 : index
    %2 = vector.load %arg2[%c0_1, %c0_2] : memref<32x512xbf16, #tpu.memory_space<vmem>>, vector<32x512xbf16>
    %cst = arith.constant dense<0.000000e+00> : vector<16x512xf32>
    %3 = tpu.matmul %1, %2, %cst {dimension_numbers = #tpu.dot_dimension_numbers<[1], [0], [0], [1], [0, 0, 1, 1], [], []>} : vector<16x32xbf16>, vector<32x512xbf16>, vector<16x512xf32> -> vector<16x512xf32>
    %c0_3 = arith.constant 0 : index
    %c0_4 = arith.constant 0 : index
    %4 = vector.load %arg3[%c0_3, %c0_4] : memref<1x512xf32, #tpu.memory_space<vmem>>, vector<1x512xf32>
    %5 = vector.broadcast %4 : vector<1x512xf32> to vector<16x512xf32>
    %6 = arith.addf %3, %5 : vector<16x512xf32>
    %cst_5 = arith.constant 0.000000e+00 : f32
    %7 = vector.broadcast %cst_5 : f32 to vector<16x512xf32>
    %8 = arith.maximumf %6, %7 : vector<16x512xf32>
    %9 = arith.truncf %8 : vector<16x512xf32> to vector<16x512xbf16>
    %c0_6 = arith.constant 0 : index
    %c0_7 = arith.constant 0 : index
    %10 = vector.load %arg4[%c0_6, %c0_7] : memref<512x256xbf16, #tpu.memory_space<vmem>>, vector<512x256xbf16>
    %cst_8 = arith.constant dense<0.000000e+00> : vector<16x256xf32>
    %11 = tpu.matmul %9, %10, %cst_8 {dimension_numbers = #tpu.dot_dimension_numbers<[1], [0], [0], [1], [0, 0, 1, 1], [], []>} : vector<16x512xbf16>, vector<512x256xbf16>, vector<16x256xf32> -> vector<16x256xf32>
    %c0_9 = arith.constant 0 : index
    %c0_10 = arith.constant 0 : index
    %12 = vector.load %arg5[%c0_9, %c0_10] : memref<1x256xf32, #tpu.memory_space<vmem>>, vector<1x256xf32>
    %13 = vector.broadcast %12 : vector<1x256xf32> to vector<16x256xf32>
    %14 = arith.addf %11, %13 : vector<16x256xf32>
    %cst_11 = arith.constant 0.000000e+00 : f32
    %15 = vector.broadcast %cst_11 : f32 to vector<16x256xf32>
    %16 = arith.maximumf %14, %15 : vector<16x256xf32>
    %c0_12 = arith.constant 0 : index
    %c0_13 = arith.constant 0 : index
    %17 = vector.load %arg6[%c0_12, %c0_13] : memref<1x256xf32, #tpu.memory_space<vmem>>, vector<1x256xf32>
    %18 = vector.broadcast %17 : vector<1x256xf32> to vector<16x256xf32>
    %19 = arith.mulf %16, %18 : vector<16x256xf32>
    %cst_14 = arith.constant dense<0.000000e+00> : vector<16xf32>
    %20 = vector.multi_reduction <add>, %19, %cst_14 [1] : vector<16x256xf32> to vector<16xf32>
    %21 = vector.shape_cast %20 : vector<16xf32> to vector<16x1xf32>
    %c0_15 = arith.constant 0 : index
    %c0_16 = arith.constant 0 : index
    %22 = memref.load %arg7[%c0_15, %c0_16] : memref<1x1xf32, #tpu.memory_space<smem>>
    %23 = vector.broadcast %22 : f32 to vector<16x1xf32>
    %24 = arith.addf %21, %23 : vector<16x1xf32>
    %cst_17 = arith.constant 0.000000e+00 : f32
    %25 = vector.broadcast %cst_17 : f32 to vector<16x1xf32>
    %26 = arith.subf %25, %24 : vector<16x1xf32>
    %27 = math.exp %26 : vector<16x1xf32>
    %cst_18 = arith.constant 1.000000e+00 : f32
    %28 = vector.broadcast %cst_18 : f32 to vector<16x1xf32>
    %29 = arith.addf %28, %27 : vector<16x1xf32>
    %cst_19 = arith.constant 1.000000e+00 : f32
    %30 = vector.broadcast %cst_19 : f32 to vector<16x1xf32>
    %31 = arith.divf %30, %29 : vector<16x1xf32>
    %c0_20 = arith.constant 0 : index
    %c0_21 = arith.constant 0 : index
    %32 = vector.load %arg8[%c0_20, %c0_21] : memref<16x1xf32, #tpu.memory_space<vmem>>, vector<16x1xf32>
    tpu.vector_store %arg8[%c0_20, %c0_21], %31 {strides = array<i32>} : memref<16x1xf32, #tpu.memory_space<vmem>>, vector<16x1xf32>,
    return
  }
  func.func @transform_0(%arg0: i32) -> (i32, i32) {
    %c0_i32 = arith.constant 0 : i32
    %c0_i32_0 = arith.constant 0 : i32
    return %arg0, %c0_i32 : i32, i32
  }
  func.func @transform_1(%arg0: i32) -> (i32, i32) {
    %c0_i32 = arith.constant 0 : i32
    %c0_i32_0 = arith.constant 0 : i32
    %c0_i32_1 = arith.constant 0 : i32
    return %c0_i32, %c0_i32_0 : i32, i32
  }
  func.func @transform_2(%arg0: i32) -> (i32, i32) {
    %c0_i32 = arith.constant 0 : i32
    %c0_i32_0 = arith.constant 0 : i32
    %c0_i32_1 = arith.constant 0 : i32
    return %c0_i32, %c0_i32_0 : i32, i32
  }
  func.func @transform_3(%arg0: i32) -> (i32, i32) {
    %c0_i32 = arith.constant 0 : i32
    %c0_i32_0 = arith.constant 0 : i32
    %c0_i32_1 = arith.constant 0 : i32
    return %c0_i32, %c0_i32_0 : i32, i32
  }
  func.func @transform_4(%arg0: i32) -> (i32, i32) {
    %c0_i32 = arith.constant 0 : i32
    %c0_i32_0 = arith.constant 0 : i32
    %c0_i32_1 = arith.constant 0 : i32
    return %c0_i32, %c0_i32_0 : i32, i32
  }
  func.func @transform_5(%arg0: i32) -> (i32, i32) {
    %c0_i32 = arith.constant 0 : i32
    %c0_i32_0 = arith.constant 0 : i32
    %c0_i32_1 = arith.constant 0 : i32
    return %c0_i32, %c0_i32_0 : i32, i32
  }
  func.func @transform_6(%arg0: i32) -> (i32, i32) {
    %c0_i32 = arith.constant 0 : i32
    %c0_i32_0 = arith.constant 0 : i32
    %c0_i32_1 = arith.constant 0 : i32
    return %c0_i32, %c0_i32_0 : i32, i32
  }
  func.func @transform_7(%arg0: i32) -> (i32, i32) {
    %c0_i32 = arith.constant 0 : i32
    %c0_i32_0 = arith.constant 0 : i32
    return %arg0, %c0_i32 : i32, i32
  }
}

</mosaic_0001>

<llo_original>
// kernel: tpu_custom_call.1
$region0: #{tpu_custom_call.1}
  #allocation0 [shape = 'u32[]', space=smem, size = 0x4, offset = 0x4, fixed_abs, tag = 'smem constant byte address 0x4 - core index']
  #allocation1 [shape = 'u32[144,128]{1,0:T(1,128)}', space=vmem, size = 0x12000, scoped, tag = 'internal scratch']
  #allocation2 [shape = 'f32[1,1]{1,0:T(1,128)S(6)}', space=smem, size = 0x200, scoped, tag = 'scoped memory for tpu_custom_call.1']
  %s0 = inlined_call_operand.hbm [shape: f32[32,32], index: 0, kind: input, shape index: {}]
  %s1 = inlined_call_operand.hbm [shape: bf16[32,512], index: 1, kind: input, shape index: {}]
  %s2 = inlined_call_operand.vmem [shape: f32[1,512], index: 2, kind: input, shape index: {}]
  %s3 = inlined_call_operand.hbm [shape: bf16[512,256], index: 3, kind: input, shape index: {}]
  %s4 = inlined_call_operand.vmem [shape: f32[1,256], index: 4, kind: input, shape index: {}]
  %s5 = inlined_call_operand.vmem [shape: f32[1,256], index: 5, kind: input, shape index: {}]
  %s6 = inlined_call_operand.<no memory space> [shape: f32[1,1], index: 6, kind: input, shape index: {}]
  %s7 = inlined_call_operand.vmem [shape: f32[32,1], index: 7, kind: output, shape index: {}]
  %s8 = sld [smem:[#allocation0]]
  $region73: #{tpu_custom_call.1} parent=0
    _
  %s10 = ssub.s32 1, %s8
  %s11 = scalar_select 0, %s10, %s8
  %12 = sst [smem:[#allocation2]] %s6
  $region1: #{tpu_custom_call.1} parent=0
    #allocation3 [shape = 'u8[16384]{0}', space=vmem, size = 0x4000, scoped, tag = 'input window, operand 0']
    #allocation4 [shape = 's32[2]{0}', space=sflag, size = 0x8, scoped, tag = 'scoped memory for tpu_custom_call.1']
    #allocation5 [shape = 'u8[32768]{0}', space=vmem, size = 0x8000, scoped, tag = 'input window, operand 1, single buffered']
    #allocation6 [shape = 's32[1]{0}', space=sflag, size = 0x4, scoped, tag = 'scoped memory for tpu_custom_call.1']
    #allocation7 [shape = 'u8[262144]{0}', space=vmem, size = 0x40000, scoped, tag = 'input window, operand 3, single buffered']
    %13 = vsyncpa [#allocation4], 0
    %s14 = scalar_lea.sflag [#allocation4], 1
    %15 = vsyncpa %s14, 0
    %16 = vsyncpa [#allocation6], 0
    loop: start=0, step=1, limit=4
    $region2: #{tpu_custom_call.1} parent=1 // loop_pre_header
      _
    $region3: #{tpu_custom_call.1} parent=1 // loop_header
      %s18 = sphi 0, %s22
      %p19 = scmp.ge.s32.totalorder %s18, 4
      %s28 = sphi 0, %s30
      %s31 = sphi 0, %s28
      %s32 = sphi 0, %s31
      %s48 = sphi 0, %s32
      %s52 = sphi 0, %s52
      %s54 = sphi 0, %s52
      %s55 = sphi 0, %s54
      %s69 = sphi 0, %s55
      %s73 = sphi 0, %s73
      %s75 = sphi 0, %s73
      %s76 = sphi 0, %s75
      %s90 = sphi 0, %s76
      %s94 = sphi 0, %s94
      %s96 = sphi 0, %s94
      %s97 = sphi 0, %s96
      %s111 = sphi 0, %s97
      %s115 = sphi 0, %s115
      %s117 = sphi 0, %s115
      %s118 = sphi 0, %s117
      %s132 = sphi 0, %s118
      %s136 = sphi 0, %s136
      %s138 = sphi 0, %s136
      %s139 = sphi 0, %s138
      %s153 = sphi 0, %s139
      %s157 = sphi 0, %s157
      %s159 = sphi 0, %s157
      %s160 = sphi 0, %s159
      %s174 = sphi 0, %s160
      %s180 = sphi 0, %s182
      %s183 = sphi 0, %s180
      %s184 = sphi 0, %s183
      %s200 = sphi 0, %s184
    $region4: #{tpu_custom_call.1} parent=1 // loop_header_branch
      %21 = sbr.rel (%p19) target = $region8
    $region5: #{tpu_custom_call.1} parent=1 // loop_body
      %s23 = ssub.s32 %s18, 1
      %s24 = ssub.s32 %s18, 2
      %s25 = sadd.s32 %s18, 1
      %s26 = ssub.s32 %s18, %s25
      %p27 = scmp.eq.s32.totalorder %s26, 0
      %s29 = sadd.s32 %s28, 1
      %s30 = scalar_select %p27, %s28, %s29
      %p33 = pneg %p27
      %p34 = scmp.eq.s32.totalorder %s18, 1
      %p35 = por %p33, %p34
      %p36 = scmp.ne.s32.totalorder %s28, %s31
      %p37 = scmp.eq.s32.totalorder %s18, 0
      %p38 = por %p36, %p37
      %p39 = scmp.ne.s32.totalorder %s28, %s31
      %p40 = scmp.eq.s32.totalorder %s23, 1
      %p41 = por %p39, %p40
      %p42 = scmp.ne.s32.totalorder %s31, %s32
      %p43 = scmp.eq.s32.totalorder %s23, 0
      %p44 = por %p42, %p43
      %p45 = scmp.ne.s32.totalorder %s31, %s32
      %p46 = scmp.eq.s32.totalorder %s24, 1
      %p47 = por %p45, %p46
      %p49 = scmp.ne.s32.totalorder %s32, %s48
      %p50 = scmp.eq.s32.totalorder %s24, 0
      %p51 = por %p49, %p50
      %s53 = sadd.s32 %s52, 1
      %p56 = scmp.eq.s32.totalorder %s18, 1
      %p57 = scmp.ne.s32.totalorder %s52, %s54
      %p58 = scmp.eq.s32.totalorder %s18, 0
      %p59 = por %p57, %p58
      %p60 = scmp.ne.s32.totalorder %s52, %s54
      %p61 = scmp.eq.s32.totalorder %s23, 1
      %p62 = por %p60, %p61
      %p63 = scmp.ne.s32.totalorder %s54, %s55
      %p64 = scmp.eq.s32.totalorder %s23, 0
      %p65 = por %p63, %p64
      %p66 = scmp.ne.s32.totalorder %s54, %s55
      %p67 = scmp.eq.s32.totalorder %s24, 1
      %p68 = por %p66, %p67
      %p70 = scmp.ne.s32.totalorder %s55, %s69
      %p71 = scmp.eq.s32.totalorder %s24, 0
      %p72 = por %p70, %p71
      %s74 = sadd.s32 %s73, 1
      %p77 = scmp.eq.s32.totalorder %s18, 1
      %p78 = scmp.ne.s32.totalorder %s73, %s75
      %p79 = scmp.eq.s32.totalorder %s18, 0
      %p80 = por %p78, %p79
      %p81 = scmp.ne.s32.totalorder %s73, %s75
      %p82 = scmp.eq.s32.totalorder %s23, 1
      %p83 = por %p81, %p82
      %p84 = scmp.ne.s32.totalorder %s75, %s76
      %p85 = scmp.eq.s32.totalorder %s23, 0
      %p86 = por %p84, %p85
      %p87 = scmp.ne.s32.totalorder %s75, %s76
      %p88 = scmp.eq.s32.totalorder %s24, 1
      %p89 = por %p87, %p88
      %p91 = scmp.ne.s32.totalorder %s76, %s90
      %p92 = scmp.eq.s32.totalorder %s24, 0
      %p93 = por %p91, %p92
      %s95 = sadd.s32 %s94, 1
      %p98 = scmp.eq.s32.totalorder %s18, 1
      %p99 = scmp.ne.s32.totalorder %s94, %s96
      %p100 = scmp.eq.s32.totalorder %s18, 0
      %p101 = por %p99, %p100
      %p102 = scmp.ne.s32.totalorder %s94, %s96
      %p103 = scmp.eq.s32.totalorder %s23, 1
      %p104 = por %p102, %p103
      %p105 = scmp.ne.s32.totalorder %s96, %s97
      %p106 = scmp.eq.s32.totalorder %s23, 0
      %p107 = por %p105, %p106
      %p108 = scmp.ne.s32.totalorder %s96, %s97
      %p109 = scmp.eq.s32.totalorder %s24, 1
      %p110 = por %p108, %p109
      %p112 = scmp.ne.s32.totalorder %s97, %s111
      %p113 = scmp.eq.s32.totalorder %s24, 0
      %p114 = por %p112, %p113
      %s116 = sadd.s32 %s115, 1
      %p119 = scmp.eq.s32.totalorder %s18, 1
      %p120 = scmp.ne.s32.totalorder %s115, %s117
      %p121 = scmp.eq.s32.totalorder %s18, 0
      %p122 = por %p120, %p121
      %p123 = scmp.ne.s32.totalorder %s115, %s117
      %p124 = scmp.eq.s32.totalorder %s23, 1
      %p125 = por %p123, %p124
      %p126 = scmp.ne.s32.totalorder %s117, %s118
      %p127 = scmp.eq.s32.totalorder %s23, 0
      %p128 = por %p126, %p127
      %p129 = scmp.ne.s32.totalorder %s117, %s118
      %p130 = scmp.eq.s32.totalorder %s24, 1
      %p131 = por %p129, %p130
      %p133 = scmp.ne.s32.totalorder %s118, %s132
      %p134 = scmp.eq.s32.totalorder %s24, 0
      %p135 = por %p133, %p134
      %s137 = sadd.s32 %s136, 1
      %p140 = scmp.eq.s32.totalorder %s18, 1
      %p141 = scmp.ne.s32.totalorder %s136, %s138
      %p142 = scmp.eq.s32.totalorder %s18, 0
      %p143 = por %p141, %p142
      %p144 = scmp.ne.s32.totalorder %s136, %s138
      %p145 = scmp.eq.s32.totalorder %s23, 1
      %p146 = por %p144, %p145
      %p147 = scmp.ne.s32.totalorder %s138, %s139
      %p148 = scmp.eq.s32.totalorder %s23, 0
      %p149 = por %p147, %p148
      %p150 = scmp.ne.s32.totalorder %s138, %s139
      %p151 = scmp.eq.s32.totalorder %s24, 1
      %p152 = por %p150, %p151
      %p154 = scmp.ne.s32.totalorder %s139, %s153
      %p155 = scmp.eq.s32.totalorder %s24, 0
      %p156 = por %p154, %p155
      %s158 = sadd.s32 %s157, 1
      %p161 = scmp.eq.s32.totalorder %s18, 1
      %p162 = scmp.ne.s32.totalorder %s157, %s159
      %p163 = scmp.eq.s32.totalorder %s18, 0
      %p164 = por %p162, %p163
      %p165 = scmp.ne.s32.totalorder %s157, %s159
      %p166 = scmp.eq.s32.totalorder %s23, 1
      %p167 = por %p165, %p166
      %p168 = scmp.ne.s32.totalorder %s159, %s160
      %p169 = scmp.eq.s32.totalorder %s23, 0
      %p170 = por %p168, %p169
      %p171 = scmp.ne.s32.totalorder %s159, %s160
      %p172 = scmp.eq.s32.totalorder %s24, 1
      %p173 = por %p171, %p172
      %p175 = scmp.ne.s32.totalorder %s160, %s174
      %p176 = scmp.eq.s32.totalorder %s24, 0
      %p177 = por %p175, %p176
      %s178 = ssub.s32 %s18, %s25
      %p179 = scmp.eq.s32.totalorder %s178, 0
      %s181 = sadd.s32 %s180, 1
      %s182 = scalar_select %p179, %s180, %s181
      %p185 = pneg %p179
      %p186 = scmp.eq.s32.totalorder %s18, 1
      %p187 = por %p185, %p186
      %p188 = scmp.ne.s32.totalorder %s180, %s183
      %p189 = scmp.eq.s32.totalorder %s18, 0
      %p190 = por %p188, %p189
      %p191 = scmp.ne.s32.totalorder %s180, %s183
      %p192 = scmp.eq.s32.totalorder %s23, 1
      %p193 = por %p191, %p192
      %p194 = scmp.ne.s32.totalorder %s183, %s184
      %p195 = scmp.eq.s32.totalorder %s23, 0
      %p196 = por %p194, %p195
      %p197 = scmp.ne.s32.totalorder %s183, %s184
      %p198 = scmp.eq.s32.totalorder %s24, 1
      %p199 = por %p197, %p198
      %p201 = scmp.ne.s32.totalorder %s184, %s200
      %p202 = scmp.eq.s32.totalorder %s24, 0
      %p203 = por %p201, %p202
      %p204 = scmp.le.s32.totalorder 1, %s18
      %p205 = scmp.lt.s32.totalorder %s18, 3
      %p206 = pnand %p204, %p205
      %p207 = pneg %p206
      // Predicated region
      $region9: #{tpu_custom_call.1} parent=5 // pred_check
        _
      $region10: #{tpu_custom_call.1} parent=5 // pred_check_branch
        %209 = sbr.rel (%p206) target = $region12
      $region11: #{tpu_custom_call.1} parent=5 // pred_region
        %s210 = ssub.s32 %s18, 1
        // Predicated region
        $region13: #{tpu_custom_call.1} parent=11 // pred_check
          %p211 = pneg %p65
        $region14: #{tpu_custom_call.1} parent=11 // pred_check_branch
          %213 = sbr.rel (%p211) target = $region16
        $region15: #{tpu_custom_call.1} parent=11 // pred_region
          %s215 = ssub.s32 1024, 1024
          %216 = vsyncadd [#allocation6], %s215
          %s217 = sshll.u32 [#allocation5], 4
          %s218 = int_to_ptr.vmem [resolvable:$true] %s217
          %223 = dma.hbm_to_vmem [thread:$0]  %s1, 1024, %s218, [#allocation6], 256, 256, 16
        $region16: #{tpu_custom_call.1} parent=11 // pred_fallthru
          _
        // Predicated region
        $region17: #{tpu_custom_call.1} parent=11 // pred_check
          %p224 = pneg %p86
        $region18: #{tpu_custom_call.1} parent=11 // pred_check_branch
          %226 = sbr.rel (%p224) target = $region20
        $region19: #{tpu_custom_call.1} parent=11 // pred_region
          _
        $region20: #{tpu_custom_call.1} parent=11 // pred_fallthru
          _
        // Predicated region
        $region21: #{tpu_custom_call.1} parent=11 // pred_check
          %p227 = pneg %p107
        $region22: #{tpu_custom_call.1} parent=11 // pred_check_branch
          %229 = sbr.rel (%p227) target = $region24
        $region23: #{tpu_custom_call.1} parent=11 // pred_region
          %s231 = ssub.s32 8192, 8192
          %232 = vsyncadd [#allocation6], %s231
          %s233 = sshll.u32 [#allocation7], 4
          %s234 = int_to_ptr.vmem [resolvable:$true] %s233
          %239 = dma.hbm_to_vmem [thread:$0]  %s3, 8192, %s234, [#allocation6], 128, 128, 8
        $region24: #{tpu_custom_call.1} parent=11 // pred_fallthru
          _
        // Predicated region
        $region25: #{tpu_custom_call.1} parent=11 // pred_check
          %p240 = pneg %p128
        $region26: #{tpu_custom_call.1} parent=11 // pred_check_branch
          %242 = sbr.rel (%p240) target = $region28
        $region27: #{tpu_custom_call.1} parent=11 // pred_region
          _
        $region28: #{tpu_custom_call.1} parent=11 // pred_fallthru
          _
        // Predicated region
        $region29: #{tpu_custom_call.1} parent=11 // pred_check
          %p243 = pneg %p149
        $region30: #{tpu_custom_call.1} parent=11 // pred_check_branch
          %245 = sbr.rel (%p243) target = $region32
        $region31: #{tpu_custom_call.1} parent=11 // pred_region
          _
        $region32: #{tpu_custom_call.1} parent=11 // pred_fallthru
          _
        // Predicated region
        $region33: #{tpu_custom_call.1} parent=11 // pred_check
          %p246 = pneg %p170
        $region34: #{tpu_custom_call.1} parent=11 // pred_check_branch
          %248 = sbr.rel (%p246) target = $region36
        $region35: #{tpu_custom_call.1} parent=11 // pred_region
          _
        $region36: #{tpu_custom_call.1} parent=11 // pred_fallthru
          _
      $region12: #{tpu_custom_call.1} parent=5 // pred_fallthru
        _
      %p249 = scmp.lt.s32.totalorder %s18, 2
      // Predicated region
      $region37: #{tpu_custom_call.1} parent=5 // pred_check
        %p250 = pneg %p249
      $region38: #{tpu_custom_call.1} parent=5 // pred_check_branch
        %252 = sbr.rel (%p250) target = $region40
      $region39: #{tpu_custom_call.1} parent=5 // pred_region
        // Predicated region
        $region41: #{tpu_custom_call.1} parent=39 // pred_check
          %p253 = pneg %p38
        $region42: #{tpu_custom_call.1} parent=39 // pred_check_branch
          %255 = sbr.rel (%p253) target = $region44
        $region43: #{tpu_custom_call.1} parent=39 // pred_region
          %s256 = sand.u32 %s28, 1
          %s257 = scalar_lea.sflag [#allocation4], %s256
          %s258 = sand.u32 %s28, 1
          %s259 = smul.addr %s258, 16
          %s260 = scalar_lea.vmem [#allocation3], %s259
          %s261 = smul.u32 2, %s18
          %s263 = ssub.s32 256, 256
          %264 = vsyncadd %s257, %s263
          %s265 = smul.addr %s261, 128
          %s266 = scalar_lea.hbm %s0, %s265
          %s267 = sshll.u32 %s260, 4
          %s268 = int_to_ptr.vmem [resolvable:$true] %s267
          %273 = dma.hbm_to_vmem [thread:$0]  %s266, 256, %s268, %s257, 128, 128, 8
        $region44: #{tpu_custom_call.1} parent=39 // pred_fallthru
          _
      $region40: #{tpu_custom_call.1} parent=5 // pred_fallthru
        _
      %p274 = scmp.le.s32.totalorder 1, %s18
      %p275 = scmp.lt.s32.totalorder %s18, 3
      %p276 = pnand %p274, %p275
      %p277 = pneg %p276
      // Predicated region
      $region45: #{tpu_custom_call.1} parent=5 // pred_check
        _
      $region46: #{tpu_custom_call.1} parent=5 // pred_check_branch
        %279 = sbr.rel (%p276) target = $region48
      $region47: #{tpu_custom_call.1} parent=5 // pred_region
        %s280 = ssub.s32 %s18, 1
        %s281 = sand.u32 %s31, 1
        %s282 = scalar_lea.sflag [#allocation4], %s281
        %s283 = sand.u32 %s31, 1
        %s284 = smul.addr %s283, 16
        %s285 = scalar_lea.vmem [#allocation3], %s284
        // Predicated region
        $region49: #{tpu_custom_call.1} parent=47 // pred_check
          %p286 = pneg %p44
        $region50: #{tpu_custom_call.1} parent=47 // pred_check_branch
          %288 = sbr.rel (%p286) target = $region52
        $region51: #{tpu_custom_call.1} parent=47 // pred_region
          %289 = dma.done %s282, 256
        $region52: #{tpu_custom_call.1} parent=47 // pred_fallthru
          _
        // Predicated region
        $region53: #{tpu_custom_call.1} parent=47 // pred_check
          %p290 = pneg %p65
        $region54: #{tpu_custom_call.1} parent=47 // pred_check_branch
          %292 = sbr.rel (%p290) target = $region56
        $region55: #{tpu_custom_call.1} parent=47 // pred_region
          %293 = dma.done [#allocation6], 1024
        $region56: #{tpu_custom_call.1} parent=47 // pred_fallthru
          _
        // Predicated region
        $region57: #{tpu_custom_call.1} parent=47 // pred_check
          %p294 = pneg %p107
        $region58: #{tpu_custom_call.1} parent=47 // pred_check_branch
          %296 = sbr.rel (%p294) target = $region60
        $region59: #{tpu_custom_call.1} parent=47 // pred_region
          %297 = dma.done [#allocation6], 8192
        $region60: #{tpu_custom_call.1} parent=47 // pred_fallthru
          _
        %s298 = sand.u32 %s31, 1
        %s299 = scalar_lea.sflag [#allocation4], %s298
        %s300 = sand.u32 %s31, 1
        %s301 = smul.addr %s300, 16
        %s302 = scalar_lea.vmem [#allocation3], %s301
        %p303 = pneg %p44
        %p304 = pneg %p41
        %p305 = pneg %p65
        %p306 = pneg %p62
        %p307 = pneg %p86
        %p308 = pneg %p83
        %p309 = pneg %p107
        %p310 = pneg %p104
        %p311 = pneg %p128
        %p312 = pneg %p125
        %p313 = pneg %p149
        %p314 = pneg %p146
        %p315 = pneg %p170
        %p316 = pneg %p167
        %p317 = pneg %p196
        %p318 = pneg %p193
        %s319 = smul.u32 2, %s23
        %p320 = scmp.lt.s32.totalorder %s319, 3
        %s321 = scalar_select %p320, %s319, 3
        %s322 = smul.addr %s321, 8
        %s323 = scalar_lea.vmem %s7, %s322
        %s324 = smul.u32 2, %s23
        %s325 = smul.u32 2, %s23
        %p326 = scmp.lt.s32.totalorder %s325, 3
        %s327 = scalar_select %p326, %s325, 3
        %s328 = smul.addr %s327, 8
        %s329 = scalar_lea.vmem %s7, %s328
        %s330 = smul.u32 2, %s23
        %v332 = vld [vmem:[%s285] sm:$0xff]
        %v333 = vld [vmem:[%s285 + $0x8] sm:$0xff]
        %v334 = vpack.c.bf16 %v333, %v332
        %v335 = vld [vmem:[#allocation5] sm:$0xff]
        %v336 = vld [vmem:[#allocation5 + $0x8] sm:$0xff]
        %v337 = vld [vmem:[#allocation5 + $0x10] sm:$0xff]
        %v338 = vld [vmem:[#allocation5 + $0x18] sm:$0xff]
        %v339 = vld [vmem:[#allocation5 + $0x20] sm:$0xff]
        %v340 = vld [vmem:[#allocation5 + $0x28] sm:$0xff]
        %v341 = vld [vmem:[#allocation5 + $0x30] sm:$0xff]
        %v342 = vld [vmem:[#allocation5 + $0x38] sm:$0xff]
        %v343 = vld [vmem:[%s2] sm:$0xf]
        %v345 = vlaneseq
        %v346 = vshrl.u32 %v345, 7
        %v347 = vsub.s32 0, %v346
        %v348 = vrot.slane %v343, %v347
        %v349 = vlaneseq
        %v350 = vshrl.u32 %v349, 7
        %v351 = vsub.s32 1, %v350
        %v352 = vrot.slane %v343, %v351
        %v353 = vlaneseq
        %v354 = vshrl.u32 %v353, 7
        %v355 = vsub.s32 2, %v354
        %v356 = vrot.slane %v343, %v355
        %v357 = vlaneseq
        %v358 = vshrl.u32 %v357, 7
        %v359 = vsub.s32 3, %v358
        %v360 = vrot.slane %v343, %v359
        %v373 = vunpack.c.l.b16 %v335
        %v374 = vunpack.c.h.b16 %v335
        %v375 = vunpack.c.l.b16 %v336
        %v376 = vunpack.c.h.b16 %v336
        %v377 = vunpack.c.l.b16 %v337
        %v378 = vunpack.c.h.b16 %v337
        %v379 = vunpack.c.l.b16 %v338
        %v380 = vunpack.c.h.b16 %v338
        %v381 = vunpack.c.l.b16 %v339
        %v382 = vunpack.c.h.b16 %v339
        %v383 = vunpack.c.l.b16 %v340
        %v384 = vunpack.c.h.b16 %v340
        %v385 = vunpack.c.l.b16 %v341
        %v386 = vunpack.c.h.b16 %v341
        %v387 = vunpack.c.l.b16 %v342
        %v388 = vunpack.c.h.b16 %v342
        %v389 = vpack.c.b16 %v377, %v373
        %v390 = vpack.c.b16 %v378, %v374
        %v391 = vpack.c.b16 %v379, %v375
        %v392 = vpack.c.b16 %v380, %v376
        %v393 = vpack.c.b16 %v385, %v381
        %v394 = vpack.c.b16 %v386, %v382
        %v395 = vpack.c.b16 %v387, %v383
        %v396 = vpack.c.b16 %v388, %v384
        %vm405 = vcmask 261120
        %v407 = vsel %vm405, %v334, 0
        %409 = vmatprep.subr.bf16.mxu0 0
        %410 = vmatpush1.bf16.msra.mxu0 0
        %411 = vmatprep.subr.bf16.mxu0 0
        %412 = vmatpush1.bf16.msra.mxu0 0
        %413 = vmatprep.subr.bf16.mxu0 0
        %414 = vmatpush1.bf16.msra.mxu0 0
        %415 = vmatprep.subr.bf16.mxu0 0
        %416 = vmatpush1.bf16.msra.mxu0 0
        %417 = vmatprep.subr.bf16.mxu0 0
        %418 = vmatpush1.bf16.msra.mxu0 0
        %419 = vmatprep.subr.bf16.mxu0 0
        %420 = vmatpush1.bf16.msra.mxu0 0
        %421 = vmatprep.subr.bf16.mxu0 %v394
        %422 = vmatpush1.bf16.msra.mxu0 %v393
        %423 = vmatprep.subr.bf16.mxu0 %v390
        %424 = vmatpush1.bf16.msra.mxu0 %v389
        %425 = vmatprep.subr.bf16.mxu0 0
        %426 = vmatpush2.bf16.msra.mxu0 0
        %427 = vmatprep.subr.bf16.mxu0 0
        %428 = vmatpush2.bf16.msra.mxu0 0
        %429 = vmatprep.subr.bf16.mxu0 0
        %430 = vmatpush2.bf16.msra.mxu0 0
        %431 = vmatprep.subr.bf16.mxu0 0
        %432 = vmatpush2.bf16.msra.mxu0 0
        %433 = vmatprep.subr.bf16.mxu0 0
        %434 = vmatpush2.bf16.msra.mxu0 0
        %435 = vmatprep.subr.bf16.mxu0 0
        %436 = vmatpush2.bf16.msra.mxu0 0
        %437 = vmatprep.subr.bf16.mxu0 0
        %438 = vmatpush2.bf16.msra.mxu0 0
        %439 = vmatprep.subr.bf16.mxu0 0
        %440 = vmatpush2.bf16.msra.mxu0 0
        %441 = vmatprep.mubr.bf16.mxu0 0
        %442 = vmatmul.mubr.bf16.gmra.mxu0 %v407
        %v443 = vpop.f32.mrf.mxu0
        %v444 = vadd.f32 %v348, %v443
        %v445 = vpop.f32.mrf.mxu0
        %v446 = vadd.f32 %v352, %v445
        %v447 = vpop.f32.mrf.mxu0
        %v448 = vadd.f32 %v348, %v447
        %v449 = vpop.f32.mrf.mxu0
        %v450 = vadd.f32 %v352, %v449
        %451 = vdwg.mxu0
        %452 = vmatprep.subr.bf16.mxu0 0
        %453 = vmatpush1.bf16.msra.mxu0 0
        %454 = vmatprep.subr.bf16.mxu0 0
        %455 = vmatpush1.bf16.msra.mxu0 0
        %456 = vmatprep.subr.bf16.mxu0 0
        %457 = vmatpush1.bf16.msra.mxu0 0
        %458 = vmatprep.subr.bf16.mxu0 0
        %459 = vmatpush1.bf16.msra.mxu0 0
        %460 = vmatprep.subr.bf16.mxu0 0
        %461 = vmatpush1.bf16.msra.mxu0 0
        %462 = vmatprep.subr.bf16.mxu0 0
        %463 = vmatpush1.bf16.msra.mxu0 0
        %464 = vmatprep.subr.bf16.mxu0 %v396
        %465 = vmatpush1.bf16.msra.mxu0 %v395
        %466 = vmatprep.subr.bf16.mxu0 %v392
        %467 = vmatpush1.bf16.msra.mxu0 %v391
        %468 = vmatprep.subr.bf16.mxu0 0
        %469 = vmatpush2.bf16.msra.mxu0 0
        %470 = vmatprep.subr.bf16.mxu0 0
        %471 = vmatpush2.bf16.msra.mxu0 0
        %472 = vmatprep.subr.bf16.mxu0 0
        %473 = vmatpush2.bf16.msra.mxu0 0
        %474 = vmatprep.subr.bf16.mxu0 0
        %475 = vmatpush2.bf16.msra.mxu0 0
        %476 = vmatprep.subr.bf16.mxu0 0
        %477 = vmatpush2.bf16.msra.mxu0 0
        %478 = vmatprep.subr.bf16.mxu0 0
        %479 = vmatpush2.bf16.msra.mxu0 0
        %480 = vmatprep.subr.bf16.mxu0 0
        %481 = vmatpush2.bf16.msra.mxu0 0
        %482 = vmatprep.subr.bf16.mxu0 0
        %483 = vmatpush2.bf16.msra.mxu0 0
        %484 = vmatprep.mubr.bf16.mxu0 0
        %485 = vmatmul.mubr.bf16.gmra.mxu0 %v407
        %v486 = vpop.f32.mrf.mxu0
        %v487 = vadd.f32 %v356, %v486
        %v488 = vpop.f32.mrf.mxu0
        %v489 = vadd.f32 %v360, %v488
        %v490 = vpop.f32.mrf.mxu0
        %v491 = vadd.f32 %v356, %v490
        %v492 = vpop.f32.mrf.mxu0
        %v493 = vadd.f32 %v360, %v492
        %494 = vdwg.mxu0
        %v495 = vmax.f32 %v444, 0.0
        %v496 = vmax.f32 %v446, 0.0
        %v497 = vmax.f32 %v487, 0.0
        %v498 = vmax.f32 %v489, 0.0
        %v499 = vmax.f32 %v448, 0.0
        %v500 = vmax.f32 %v450, 0.0
        %v501 = vmax.f32 %v491, 0.0
        %v502 = vmax.f32 %v493, 0.0
        %v503 = vpack.c.bf16 %v499, %v495
        %v504 = vpack.c.bf16 %v500, %v496
        %v505 = vpack.c.bf16 %v501, %v497
        %v506 = vpack.c.bf16 %v502, %v498
        %v507 = vld [vmem:[#allocation7] sm:$0xff]
        %v508 = vld [vmem:[#allocation7 + $0x8] sm:$0xff]
        %v509 = vld [vmem:[#allocation7 + $0x10] sm:$0xff]
        %v510 = vld [vmem:[#allocation7 + $0x18] sm:$0xff]
        %v511 = vld [vmem:[#allocation7 + $0x20] sm:$0xff]
        %v512 = vld [vmem:[#allocation7 + $0x28] sm:$0xff]
        %v513 = vld [vmem:[#allocation7 + $0x30] sm:$0xff]
        %v514 = vld [vmem:[#allocation7 + $0x38] sm:$0xff]
        %v515 = vld [vmem:[#allocation7 + $0x40] sm:$0xff]
        %v516 = vld [vmem:[#allocation7 + $0x48] sm:$0xff]
        %v517 = vld [vmem:[#allocation7 + $0x50] sm:$0xff]
        %v518 = vld [vmem:[#allocation7 + $0x58] sm:$0xff]
        %v519 = vld [vmem:[#allocation7 + $0x60] sm:$0xff]
        %v520 = vld [vmem:[#allocation7 + $0x68] sm:$0xff]
        %v521 = vld [vmem:[#allocation7 + $0x70] sm:$0xff]
        %v522 = vld [vmem:[#allocation7 + $0x78] sm:$0xff]
        %v523 = vld [vmem:[#allocation7 + $0x80] sm:$0xff]
        %v524 = vld [vmem:[#allocation7 + $0x88] sm:$0xff]
        %v525 = vld [vmem:[#allocation7 + $0x90] sm:$0xff]
        %v526 = vld [vmem:[#allocation7 + $0x98] sm:$0xff]
        %v527 = vld [vmem:[#allocation7 + $0xa0] sm:$0xff]
        %v528 = vld [vmem:[#allocation7 + $0xa8] sm:$0xff]
        %v529 = vld [vmem:[#allocation7 + $0xb0] sm:$0xff]
        %v530 = vld [vmem:[#allocation7 + $0xb8] sm:$0xff]
        %v531 = vld [vmem:[#allocation7 + $0xc0] sm:$0xff]
        %v532 = vld [vmem:[#allocation7 + $0xc8] sm:$0xff]
        %v533 = vld [vmem:[#allocation7 + $0xd0] sm:$0xff]
        %v534 = vld [vmem:[#allocation7 + $0xd8] sm:$0xff]
        %v535 = vld [vmem:[#allocation7 + $0xe0] sm:$0xff]
        %v536 = vld [vmem:[#allocation7 + $0xe8] sm:$0xff]
        %v537 = vld [vmem:[#allocation7 + $0xf0] sm:$0xff]
        %v538 = vld [vmem:[#allocation7 + $0xf8] sm:$0xff]
        %v539 = vld [vmem:[#allocation7 + $0x100] sm:$0xff]
        %v540 = vld [vmem:[#allocation7 + $0x108] sm:$0xff]
        %v541 = vld [vmem:[#allocation7 + $0x110] sm:$0xff]
        %v542 = vld [vmem:[#allocation7 + $0x118] sm:$0xff]
        %v543 = vld [vmem:[#allocation7 + $0x120] sm:$0xff]
        %v544 = vld [vmem:[#allocation7 + $0x128] sm:$0xff]
        %v545 = vld [vmem:[#allocation7 + $0x130] sm:$0xff]
        %v546 = vld [vmem:[#allocation7 + $0x138] sm:$0xff]
        %v547 = vld [vmem:[#allocation7 + $0x140] sm:$0xff]
        %v548 = vld [vmem:[#allocation7 + $0x148] sm:$0xff]
        %v549 = vld [vmem:[#allocation7 + $0x150] sm:$0xff]
        %v550 = vld [vmem:[#allocation7 + $0x158] sm:$0xff]
        %v551 = vld [vmem:[#allocation7 + $0x160] sm:$0xff]
        %v552 = vld [vmem:[#allocation7 + $0x168] sm:$0xff]
        %v553 = vld [vmem:[#allocation7 + $0x170] sm:$0xff]
        %v554 = vld [vmem:[#allocation7 + $0x178] sm:$0xff]
        %v555 = vld [vmem:[#allocation7 + $0x180] sm:$0xff]
        %v556 = vld [vmem:[#allocation7 + $0x188] sm:$0xff]
        %v557 = vld [vmem:[#allocation7 + $0x190] sm:$0xff]
        %v558 = vld [vmem:[#allocation7 + $0x198] sm:$0xff]
        %v559 = vld [vmem:[#allocation7 + $0x1a0] sm:$0xff]
        %v560 = vld [vmem:[#allocation7 + $0x1a8] sm:$0xff]
        %v561 = vld [vmem:[#allocation7 + $0x1b0] sm:$0xff]
        %v562 = vld [vmem:[#allocation7 + $0x1b8] sm:$0xff]
        %v563 = vld [vmem:[#allocation7 + $0x1c0] sm:$0xff]
        %v564 = vld [vmem:[#allocation7 + $0x1c8] sm:$0xff]
        %v565 = vld [vmem:[#allocation7 + $0x1d0] sm:$0xff]
        %v566 = vld [vmem:[#allocation7 + $0x1d8] sm:$0xff]
        %v567 = vld [vmem:[#allocation7 + $0x1e0] sm:$0xff]
        %v568 = vld [vmem:[#allocation7 + $0x1e8] sm:$0xff]
        %v569 = vld [vmem:[#allocation7 + $0x1f0] sm:$0xff]
        %v570 = vld [vmem:[#allocation7 + $0x1f8] sm:$0xff]
        %v571 = vld [vmem:[%s4] sm:$0x3]
        %v573 = vlaneseq
        %v574 = vshrl.u32 %v573, 7
        %v575 = vsub.s32 0, %v574
        %v576 = vrot.slane %v571, %v575
        %v577 = vlaneseq
        %v578 = vshrl.u32 %v577, 7
        %v579 = vsub.s32 1, %v578
        %v580 = vrot.slane %v571, %v579
        %v647 = vunpack.c.l.b16 %v507
        %v648 = vunpack.c.h.b16 %v507
        %v649 = vunpack.c.l.b16 %v508
        %v650 = vunpack.c.h.b16 %v508
        %v651 = vunpack.c.l.b16 %v509
        %v652 = vunpack.c.h.b16 %v509
        %v653 = vunpack.c.l.b16 %v510
        %v654 = vunpack.c.h.b16 %v510
        %v655 = vunpack.c.l.b16 %v511
        %v656 = vunpack.c.h.b16 %v511
        %v657 = vunpack.c.l.b16 %v512
        %v658 = vunpack.c.h.b16 %v512
        %v659 = vunpack.c.l.b16 %v513
        %v660 = vunpack.c.h.b16 %v513
        %v661 = vunpack.c.l.b16 %v514
        %v662 = vunpack.c.h.b16 %v514
        %v663 = vunpack.c.l.b16 %v515
        %v664 = vunpack.c.h.b16 %v515
        %v665 = vunpack.c.l.b16 %v516
        %v666 = vunpack.c.h.b16 %v516
        %v667 = vunpack.c.l.b16 %v517
        %v668 = vunpack.c.h.b16 %v517
        %v669 = vunpack.c.l.b16 %v518
        %v670 = vunpack.c.h.b16 %v518
        %v671 = vunpack.c.l.b16 %v519
        %v672 = vunpack.c.h.b16 %v519
        %v673 = vunpack.c.l.b16 %v520
        %v674 = vunpack.c.h.b16 %v520
        %v675 = vunpack.c.l.b16 %v521
        %v676 = vunpack.c.h.b16 %v521
        %v677 = vunpack.c.l.b16 %v522
        %v678 = vunpack.c.h.b16 %v522
        %v679 = vunpack.c.l.b16 %v523
        %v680 = vunpack.c.h.b16 %v523
        %v681 = vunpack.c.l.b16 %v524
        %v682 = vunpack.c.h.b16 %v524
        %v683 = vunpack.c.l.b16 %v525
        %v684 = vunpack.c.h.b16 %v525
        %v685 = vunpack.c.l.b16 %v526
        %v686 = vunpack.c.h.b16 %v526
        %v687 = vunpack.c.l.b16 %v527
        %v688 = vunpack.c.h.b16 %v527
        %v689 = vunpack.c.l.b16 %v528
        %v690 = vunpack.c.h.b16 %v528
        %v691 = vunpack.c.l.b16 %v529
        %v692 = vunpack.c.h.b16 %v529
        %v693 = vunpack.c.l.b16 %v530
        %v694 = vunpack.c.h.b16 %v530
        %v695 = vunpack.c.l.b16 %v531
        %v696 = vunpack.c.h.b16 %v531
        %v697 = vunpack.c.l.b16 %v532
        %v698 = vunpack.c.h.b16 %v532
        %v699 = vunpack.c.l.b16 %v533
        %v700 = vunpack.c.h.b16 %v533
        %v701 = vunpack.c.l.b16 %v534
        %v702 = vunpack.c.h.b16 %v534
        %v703 = vunpack.c.l.b16 %v535
        %v704 = vunpack.c.h.b16 %v535
        %v705 = vunpack.c.l.b16 %v536
        %v706 = vunpack.c.h.b16 %v536
        %v707 = vunpack.c.l.b16 %v537
        %v708 = vunpack.c.h.b16 %v537
        %v709 = vunpack.c.l.b16 %v538
        %v710 = vunpack.c.h.b16 %v538
        %v711 = vunpack.c.l.b16 %v539
        %v712 = vunpack.c.h.b16 %v539
        %v713 = vunpack.c.l.b16 %v540
        %v714 = vunpack.c.h.b16 %v540
        %v715 = vunpack.c.l.b16 %v541
        %v716 = vunpack.c.h.b16 %v541
        %v717 = vunpack.c.l.b16 %v542
        %v718 = vunpack.c.h.b16 %v542
        %v719 = vunpack.c.l.b16 %v543
        %v720 = vunpack.c.h.b16 %v543
        %v721 = vunpack.c.l.b16 %v544
        %v722 = vunpack.c.h.b16 %v544
        %v723 = vunpack.c.l.b16 %v545
        %v724 = vunpack.c.h.b16 %v545
        %v725 = vunpack.c.l.b16 %v546
        %v726 = vunpack.c.h.b16 %v546
        %v727 = vunpack.c.l.b16 %v547
        %v728 = vunpack.c.h.b16 %v547
        %v729 = vunpack.c.l.b16 %v548
        %v730 = vunpack.c.h.b16 %v548
        %v731 = vunpack.c.l.b16 %v549
        %v732 = vunpack.c.h.b16 %v549
        %v733 = vunpack.c.l.b16 %v550
        %v734 = vunpack.c.h.b16 %v550
        %v735 = vunpack.c.l.b16 %v551
        %v736 = vunpack.c.h.b16 %v551
        %v737 = vunpack.c.l.b16 %v552
        %v738 = vunpack.c.h.b16 %v552
        %v739 = vunpack.c.l.b16 %v553
        %v740 = vunpack.c.h.b16 %v553
        %v741 = vunpack.c.l.b16 %v554
        %v742 = vunpack.c.h.b16 %v554
        %v743 = vunpack.c.l.b16 %v555
        %v744 = vunpack.c.h.b16 %v555
        %v745 = vunpack.c.l.b16 %v556
        %v746 = vunpack.c.h.b16 %v556
        %v747 = vunpack.c.l.b16 %v557
        %v748 = vunpack.c.h.b16 %v557
        %v749 = vunpack.c.l.b16 %v558
        %v750 = vunpack.c.h.b16 %v558
        %v751 = vunpack.c.l.b16 %v559
        %v752 = vunpack.c.h.b16 %v559
        %v753 = vunpack.c.l.b16 %v560
        %v754 = vunpack.c.h.b16 %v560
        %v755 = vunpack.c.l.b16 %v561
        %v756 = vunpack.c.h.b16 %v561
        %v757 = vunpack.c.l.b16 %v562
        %v758 = vunpack.c.h.b16 %v562
        %v759 = vunpack.c.l.b16 %v563
        %v760 = vunpack.c.h.b16 %v563
        %v761 = vunpack.c.l.b16 %v564
        %v762 = vunpack.c.h.b16 %v564
        %v763 = vunpack.c.l.b16 %v565
        %v764 = vunpack.c.h.b16 %v565
        %v765 = vunpack.c.l.b16 %v566
        %v766 = vunpack.c.h.b16 %v566
        %v767 = vunpack.c.l.b16 %v567
        %v768 = vunpack.c.h.b16 %v567
        %v769 = vunpack.c.l.b16 %v568
        %v770 = vunpack.c.h.b16 %v568
        %v771 = vunpack.c.l.b16 %v569
        %v772 = vunpack.c.h.b16 %v569
        %v773 = vunpack.c.l.b16 %v570
        %v774 = vunpack.c.h.b16 %v570
        %v775 = vpack.c.b16 %v649, %v647
        %v776 = vpack.c.b16 %v650, %v648
        %v777 = vpack.c.b16 %v653, %v651
        %v778 = vpack.c.b16 %v654, %v652
        %v779 = vpack.c.b16 %v657, %v655
        %v780 = vpack.c.b16 %v658, %v656
        %v781 = vpack.c.b16 %v661, %v659
        %v782 = vpack.c.b16 %v662, %v660
        %v783 = vpack.c.b16 %v665, %v663
        %v784 = vpack.c.b16 %v666, %v664
        %v785 = vpack.c.b16 %v669, %v667
        %v786 = vpack.c.b16 %v670, %v668
        %v787 = vpack.c.b16 %v673, %v671
        %v788 = vpack.c.b16 %v674, %v672
        %v789 = vpack.c.b16 %v677, %v675
        %v790 = vpack.c.b16 %v678, %v676
        %v791 = vpack.c.b16 %v681, %v679
        %v792 = vpack.c.b16 %v682, %v680
        %v793 = vpack.c.b16 %v685, %v683
        %v794 = vpack.c.b16 %v686, %v684
        %v795 = vpack.c.b16 %v689, %v687
        %v796 = vpack.c.b16 %v690, %v688
        %v797 = vpack.c.b16 %v693, %v691
        %v798 = vpack.c.b16 %v694, %v692
        %v799 = vpack.c.b16 %v697, %v695
        %v800 = vpack.c.b16 %v698, %v696
        %v801 = vpack.c.b16 %v701, %v699
        %v802 = vpack.c.b16 %v702, %v700
        %v803 = vpack.c.b16 %v705, %v703
        %v804 = vpack.c.b16 %v706, %v704
        %v805 = vpack.c.b16 %v709, %v707
        %v806 = vpack.c.b16 %v710, %v708
        %v807 = vpack.c.b16 %v713, %v711
        %v808 = vpack.c.b16 %v714, %v712
        %v809 = vpack.c.b16 %v717, %v715
        %v810 = vpack.c.b16 %v718, %v716
        %v811 = vpack.c.b16 %v721, %v719
        %v812 = vpack.c.b16 %v722, %v720
        %v813 = vpack.c.b16 %v725, %v723
        %v814 = vpack.c.b16 %v726, %v724
        %v815 = vpack.c.b16 %v729, %v727
        %v816 = vpack.c.b16 %v730, %v728
        %v817 = vpack.c.b16 %v733, %v731
        %v818 = vpack.c.b16 %v734, %v732
        %v819 = vpack.c.b16 %v737, %v735
        %v820 = vpack.c.b16 %v738, %v736
        %v821 = vpack.c.b16 %v741, %v739
        %v822 = vpack.c.b16 %v742, %v740
        %v823 = vpack.c.b16 %v745, %v743
        %v824 = vpack.c.b16 %v746, %v744
        %v825 = vpack.c.b16 %v749, %v747
        %v826 = vpack.c.b16 %v750, %v748
        %v827 = vpack.c.b16 %v753, %v751
        %v828 = vpack.c.b16 %v754, %v752
        %v829 = vpack.c.b16 %v757, %v755
        %v830 = vpack.c.b16 %v758, %v756
        %v831 = vpack.c.b16 %v761, %v759
        %v832 = vpack.c.b16 %v762, %v760
        %v833 = vpack.c.b16 %v765, %v763
        %v834 = vpack.c.b16 %v766, %v764
        %v835 = vpack.c.b16 %v769, %v767
        %v836 = vpack.c.b16 %v770, %v768
        %v837 = vpack.c.b16 %v773, %v771
        %v838 = vpack.c.b16 %v774, %v772
        %903 = vmatprep.subr.bf16.mxu0 %v790
        %904 = vmatpush1.bf16.msra.mxu0 %v789
        %905 = vmatprep.subr.bf16.mxu0 %v788
        %906 = vmatpush1.bf16.msra.mxu0 %v787
        %907 = vmatprep.subr.bf16.mxu0 %v786
        %908 = vmatpush1.bf16.msra.mxu0 %v785
        %909 = vmatprep.subr.bf16.mxu0 %v784
        %910 = vmatpush1.bf16.msra.mxu0 %v783
        %911 = vmatprep.subr.bf16.mxu0 %v782
        %912 = vmatpush1.bf16.msra.mxu0 %v781
        %913 = vmatprep.subr.bf16.mxu0 %v780
        %914 = vmatpush1.bf16.msra.mxu0 %v779
        %915 = vmatprep.subr.bf16.mxu0 %v778
        %916 = vmatpush1.bf16.msra.mxu0 %v777
        %917 = vmatprep.subr.bf16.mxu0 %v776
        %918 = vmatpush1.bf16.msra.mxu0 %v775
        %919 = vmatprep.subr.bf16.mxu0 %v806
        %920 = vmatpush2.bf16.msra.mxu0 %v805
        %921 = vmatprep.subr.bf16.mxu0 %v804
        %922 = vmatpush2.bf16.msra.mxu0 %v803
        %923 = vmatprep.subr.bf16.mxu0 %v802
        %924 = vmatpush2.bf16.msra.mxu0 %v801
        %925 = vmatprep.subr.bf16.mxu0 %v800
        %926 = vmatpush2.bf16.msra.mxu0 %v799
        %927 = vmatprep.subr.bf16.mxu0 %v798
        %928 = vmatpush2.bf16.msra.mxu0 %v797
        %929 = vmatprep.subr.bf16.mxu0 %v796
        %930 = vmatpush2.bf16.msra.mxu0 %v795
        %931 = vmatprep.subr.bf16.mxu0 %v794
        %932 = vmatpush2.bf16.msra.mxu0 %v793
        %933 = vmatprep.subr.bf16.mxu0 %v792
        %934 = vmatpush2.bf16.msra.mxu0 %v791
        %935 = vmatprep.mubr.bf16.mxu0 %v504
        %936 = vmatmul.mubr.bf16.gmra.mxu0 %v503
        %v937 = vpop.f32.mrf.mxu0
        %v938 = vadd.f32 %v576, %v937
        %v939 = vpop.f32.mrf.mxu0
        %v940 = vadd.f32 %v580, %v939
        %v941 = vpop.f32.mrf.mxu0
        %v942 = vadd.f32 %v576, %v941
        %v943 = vpop.f32.mrf.mxu0
        %v944 = vadd.f32 %v580, %v943
        %945 = vdwg.mxu0
        %946 = vmatprep.subr.bf16.mxu0 %v822
        %947 = vmatpush1.bf16.msra.mxu0 %v821
        %948 = vmatprep.subr.bf16.mxu0 %v820
        %949 = vmatpush1.bf16.msra.mxu0 %v819
        %950 = vmatprep.subr.bf16.mxu0 %v818
        %951 = vmatpush1.bf16.msra.mxu0 %v817
        %952 = vmatprep.subr.bf16.mxu0 %v816
        %953 = vmatpush1.bf16.msra.mxu0 %v815
        %954 = vmatprep.subr.bf16.mxu0 %v814
        %955 = vmatpush1.bf16.msra.mxu0 %v813
        %956 = vmatprep.subr.bf16.mxu0 %v812
        %957 = vmatpush1.bf16.msra.mxu0 %v811
        %958 = vmatprep.subr.bf16.mxu0 %v810
        %959 = vmatpush1.bf16.msra.mxu0 %v809
        %960 = vmatprep.subr.bf16.mxu0 %v808
        %961 = vmatpush1.bf16.msra.mxu0 %v807
        %962 = vmatprep.subr.bf16.mxu0 %v838
        %963 = vmatpush2.bf16.msra.mxu0 %v837
        %964 = vmatprep.subr.bf16.mxu0 %v836
        %965 = vmatpush2.bf16.msra.mxu0 %v835
        %966 = vmatprep.subr.bf16.mxu0 %v834
        %967 = vmatpush2.bf16.msra.mxu0 %v833
        %968 = vmatprep.subr.bf16.mxu0 %v832
        %969 = vmatpush2.bf16.msra.mxu0 %v831
        %970 = vmatprep.subr.bf16.mxu0 %v830
        %971 = vmatpush2.bf16.msra.mxu0 %v829
        %972 = vmatprep.subr.bf16.mxu0 %v828
        %973 = vmatpush2.bf16.msra.mxu0 %v827
        %974 = vmatprep.subr.bf16.mxu0 %v826
        %975 = vmatpush2.bf16.msra.mxu0 %v825
        %976 = vmatprep.subr.bf16.mxu0 %v824
        %977 = vmatpush2.bf16.msra.mxu0 %v823
        %978 = vmatprep.mubr.bf16.mxu0 %v506
        %979 = vmatmul.mubr.bf16.gmra.mxu0 %v505
        %v980 = vpop.f32.mrf.mxu0
        %v981 = vadd.f32 %v938, %v980
        %v982 = vpop.f32.mrf.mxu0
        %v983 = vadd.f32 %v940, %v982
        %v984 = vpop.f32.mrf.mxu0
        %v985 = vadd.f32 %v942, %v984
        %v986 = vpop.f32.mrf.mxu0
        %v987 = vadd.f32 %v944, %v986
        %988 = vdwg.mxu0
        %v989 = vmax.f32 %v981, 0.0
        %v990 = vmax.f32 %v983, 0.0
        %v991 = vmax.f32 %v985, 0.0
        %v992 = vmax.f32 %v987, 0.0
        %v993 = vld [vmem:[%s5] sm:$0x3]
        %v995 = vlaneseq
        %v996 = vshrl.u32 %v995, 7
        %v997 = vsub.s32 0, %v996
        %v998 = vrot.slane %v993, %v997
        %v999 = vlaneseq
        %v1000 = vshrl.u32 %v999, 7
        %v1001 = vsub.s32 1, %v1000
        %v1002 = vrot.slane %v993, %v1001
        %v1005 = vmul.f32 %v989, %v998
        %v1006 = vmul.f32 %v990, %v1002
        %v1007 = vmul.f32 %v991, %v998
        %v1008 = vmul.f32 %v992, %v1002
        %v1009 = vadd.f32 %v1005, %v1006
        %1010 = vadd.xlane.f32.xlu0 %v1009
        %v1011 = vpop.xlane.xlu0 %1010
        %v1012 = vadd.f32 %v1007, %v1008
        %1013 = vadd.xlane.f32.xlu0 %v1012
        %v1014 = vpop.xlane.xlu0 %1013
        %s1015 = sld [smem:[#allocation2]]
        %v1016 = vstv %s1015
        %v1017 = vadd.f32 %v1011, %v1016
        %v1018 = vadd.f32 %v1014, %v1016
        %v1019 = vsub.f32 0.0, %v1017
        %v1020 = vsub.f32 0.0, %v1018
        %v1021 = vmul.f32 %v1019, 1.442695
        %v1022 = vpow.pop %v1021
        %v1023 = vmul.f32 %v1020, 1.442695
        %v1024 = vpow.pop %v1023
        %v1025 = vadd.f32 %v1022, 1.0
        %v1026 = vadd.f32 %v1024, 1.0
        %v1027 = vrcp.pop %v1025
        %v1028 = vmul.f32 1.0, %v1027
        %v1029 = vrcp.pop %v1026
        %v1030 = vmul.f32 1.0, %v1029
        %vm1031 = vcmask 7168
        %1032 = vst.msk [vmem:[%s329] sm:$0xff] %vm1031, %v1028
        %1033 = vst.msk [vmem:[%s329 + $0x8] sm:$0xff] %vm1031, %v1030
        %s1034 = smul.u32 2, %s23
        %p1035 = scmp.lt.s32.totalorder %s1034, 3
        %s1036 = scalar_select %p1035, %s1034, 3
        %s1037 = smul.addr %s1036, 8
        %s1038 = scalar_lea.vmem %s7, %s1037
        // Predicated region
        $region61: #{tpu_custom_call.1} parent=47 // pred_check
          %p1039 = pneg %p193
        $region62: #{tpu_custom_call.1} parent=47 // pred_check_branch
          %1041 = sbr.rel (%p1039) target = $region64
        $region63: #{tpu_custom_call.1} parent=47 // pred_region
          %s1042 = smul.u32 2, %s23
        $region64: #{tpu_custom_call.1} parent=47 // pred_fallthru
          _
      $region48: #{tpu_custom_call.1} parent=5 // pred_fallthru
        _
      %p1043 = scmp.le.s32.totalorder 2, %s18
      // Predicated region
      $region65: #{tpu_custom_call.1} parent=5 // pred_check
        %p1044 = pneg %p1043
      $region66: #{tpu_custom_call.1} parent=5 // pred_check_branch
        %1046 = sbr.rel (%p1044) target = $region68
      $region67: #{tpu_custom_call.1} parent=5 // pred_region
        %s1047 = ssub.s32 %s18, 2
        // Predicated region
        $region69: #{tpu_custom_call.1} parent=67 // pred_check
          %p1048 = pneg %p199
        $region70: #{tpu_custom_call.1} parent=67 // pred_check_branch
          %1050 = sbr.rel (%p1048) target = $region72
        $region71: #{tpu_custom_call.1} parent=67 // pred_region
          %s1051 = smul.u32 2, %s24
          %p1052 = scmp.lt.s32.totalorder %s1051, 3
          %s1053 = scalar_select %p1052, %s1051, 3
          %s1054 = smul.addr %s1053, 8
          %s1055 = scalar_lea.vmem %s7, %s1054
        $region72: #{tpu_custom_call.1} parent=67 // pred_fallthru
          _
      $region68: #{tpu_custom_call.1} parent=5 // pred_fallthru
        _
    $region6: #{tpu_custom_call.1} parent=1 // loop_footer
      %s22 = sadd.s32 1, %s18
    $region7: #{tpu_custom_call.1} parent=1 // loop_footer_branch
      %17 = sbr.rel target = $region3
    $region8: #{tpu_custom_call.1} parent=1 // loop_exit
      _
    %1056 = vsyncpa [#allocation4], 1
    %s1057 = scalar_lea.sflag [#allocation4], 1
    %1058 = vsyncpa %s1057, 1
    %1059 = vsyncpa [#allocation6], 1

</llo_original>
